<compile_context>
chip_gen: v5e
topology: v5e:2x2
jax: 0.10.0
libtpu: 0.0.40
codegen_flags: <defaults>
</compile_context>

<pallas_src>
import math
import jax
import jax.numpy as jnp
from jax.experimental import pallas as pl
from jax.experimental.pallas import tpu as pltpu


def _round_up(a: int, b: int) -> int:
    return (a + b - 1) // b * b


def _gcn_fused_kernel(x_ref, w_ref, adj_ref, b_ref, o_ref, acc_ref):
    """One (row-tile i, node-K-tile k) step of: adj @ (X @ W) + bias.

    x_ref   : (tile_k, F_in)      bf16   -- rows k of X
    w_ref   : (F_in,  F_out_p)    bf16   -- full weight (padded cols, resident)
    adj_ref : (tile_m, tile_k)    bf16   -- adj block (rows i, cols k)
    b_ref   : (1,     F_out_p)    f32    -- bias (padded cols, resident)
    o_ref   : (tile_m, F_out_p)   f32    -- output row tile
    acc_ref : (tile_m, F_out_p)   f32    -- VMEM accumulator scratch
    """
    k = pl.program_id(1)

    @pl.when(k == 0)
    def _():
        # Fold the bias into the accumulator init (saves the epilogue add).
        acc_ref[...] = jnp.broadcast_to(b_ref[...], acc_ref.shape)

    # support_k = X[k-tile] @ W   (bf16 operands, f32 accumulate on MXU)
    support_k = jnp.dot(x_ref[...], w_ref[...],
                        preferred_element_type=jnp.float32)

    # acc += adj[i-tile, k-tile] @ support_k   (bf16 operands, f32 accumulate)
    acc_ref[...] += jnp.dot(adj_ref[...], support_k.astype(jnp.bfloat16),
                            preferred_element_type=jnp.float32)

    @pl.when(k == pl.num_programs(1) - 1)
    def _():
        o_ref[...] = acc_ref[...].astype(o_ref.dtype)


def graph_convolution(x, adj, weight, bias=None, *, tile_m=128, tile_k=128):
    """GCN forward: adj @ (x @ weight) + bias, fused into a single Pallas kernel."""
    n, f_in = x.shape
    f_out = weight.shape[1]
    if bias is None:
        bias = jnp.zeros((f_out,), jnp.float32)

    # ---- Padding -----------------------------------------------------------
    # Lane-pad the output feature dim to a multiple of 128 (unmasked stores).
    f_out_p = _round_up(f_out, 128)
    # Pad the node dim so arbitrary graph sizes divide the tiles.
    tile_m = min(tile_m, _round_up(n, 8))
    tile_k = min(tile_k, _round_up(n, 8))
    n_p = _round_up(n, math.lcm(tile_m, tile_k))

    # bf16 operands for the MXU; accumulation stays f32 in the kernel.
    w_p = jnp.pad(weight, ((0, 0), (0, f_out_p - f_out))).astype(jnp.bfloat16)
    b2d = jnp.pad(bias, (0, f_out_p - f_out)).reshape(1, f_out_p).astype(jnp.float32)
    x_p = jnp.pad(x, ((0, n_p - n), (0, 0))).astype(jnp.bfloat16)
    adj_p = jnp.pad(adj, ((0, n_p - n), (0, n_p - n))).astype(jnp.bfloat16)

    grid_i = n_p // tile_m
    grid_k = n_p // tile_k

    # Advisory cost hint for XLA's scheduler around the custom call.
    flops = 2 * n_p * n_p * f_out_p + 2 * grid_i * n_p * f_in * f_out_p
    bytes_accessed = (adj_p.size * 2 + grid_i * x_p.size * 2
                      + w_p.size * 2 + n_p * f_out_p * 4)
    cost = pl.CostEstimate(flops=flops, transcendentals=0,
                           bytes_accessed=bytes_accessed)

    out_p = pl.pallas_call(
        _gcn_fused_kernel,
        out_shape=jax.ShapeDtypeStruct((n_p, f_out_p), jnp.float32),
        grid_spec=pltpu.PrefetchScalarGridSpec(
            num_scalar_prefetch=0,
            grid=(grid_i, grid_k),
            in_specs=[
                pl.BlockSpec((tile_k, f_in), lambda i, k: (k, 0)),    # X k-tile
                pl.BlockSpec((f_in, f_out_p), lambda i, k: (0, 0)),   # W (resident)
                pl.BlockSpec((tile_m, tile_k), lambda i, k: (i, k)),  # adj block
                pl.BlockSpec((1, f_out_p), lambda i, k: (0, 0)),      # bias (resident)
            ],
            out_specs=pl.BlockSpec((tile_m, f_out_p), lambda i, k: (i, 0)),
            scratch_shapes=[pltpu.VMEM((tile_m, f_out_p), jnp.float32)],
        ),
        compiler_params=pltpu.CompilerParams(
            dimension_semantics=("parallel", "arbitrary")),
        cost_estimate=cost,
    )(x_p, w_p, adj_p, b2d)

    return out_p[:n, :f_out]


if __name__ == "__main__":
    # Small problem sizes consistent with the module's forward
    # (>= 2 row tiles so both v7x TensorCores are fed).
    NUM_NODES = 256
    IN_FEATURES = 32
    OUT_FEATURES = 64

    key = jax.random.PRNGKey(0)
    k_x, k_w, k_b, k_adj = jax.random.split(key, 4)

    # Deterministic parameter init mirroring reset_parameters():
    # uniform(-stdv, stdv) with stdv = 1/sqrt(out_features)
    stdv = 1.0 / math.sqrt(OUT_FEATURES)
    weight = jax.random.uniform(k_w, (IN_FEATURES, OUT_FEATURES),
                                minval=-stdv, maxval=stdv, dtype=jnp.float32)
    bias = jax.random.uniform(k_b, (OUT_FEATURES,),
                              minval=-stdv, maxval=stdv, dtype=jnp.float32)

    # Node feature matrix.
    x = jax.random.normal(k_x, (NUM_NODES, IN_FEATURES), dtype=jnp.float32)

    # Dense (row-normalized) adjacency with self-loops, built deterministically.
    # (The reference uses a sparse adj; spmm == mm semantically.)
    mask = (jax.random.uniform(k_adj, (NUM_NODES, NUM_NODES)) < 0.05
            ).astype(jnp.float32)
    adj = mask + jnp.eye(NUM_NODES, dtype=jnp.float32)
    adj = adj / jnp.sum(adj, axis=1, keepdims=True)

    gcn = jax.jit(graph_convolution)
    out = gcn(x, adj, weight, bias)
    out = jax.block_until_ready(out)

    # Reference check (plain JAX f32 == torch.mm / torch.spmm semantics).
    # bf16 MXU operands => loosen tolerance slightly vs the f32 reference.
    ref = adj @ (x @ weight) + bias[None, :]
    assert out.shape == (NUM_NODES, OUT_FEATURES)
    assert jnp.allclose(out, ref, atol=1e-2, rtol=1e-2), (
        float(jnp.max(jnp.abs(out - ref))))

    print("KERNEL_OK")
</pallas_src>

<mosaic_0001>
module attributes {stable_mosaic.version = 11 : i64} {
  func.func @_gcn_fused_kernel(%arg0: i32, %arg1: i32, %arg2: memref<128x32xbf16, #tpu.memory_space<vmem>>, %arg3: memref<32x128xbf16, #tpu.memory_space<vmem>>, %arg4: memref<128x128xbf16, #tpu.memory_space<vmem>>, %arg5: memref<1x128xf32, #tpu.memory_space<vmem>>, %arg6: memref<128x128xf32, #tpu.memory_space<vmem>>, %arg7: memref<128x128xf32, #tpu.memory_space<vmem>>) attributes {dimension_semantics = [#tpu.dimension_semantics<parallel>, #tpu.dimension_semantics<arbitrary>], iteration_bounds = array<i64: 2, 2>, scalar_prefetch = 0 : i64, scratch_operands = 1 : i64, tpu.core_type = #tpu.core_type<tc>, window_params = [{transform_indices = @transform_0, window_bounds = array<i64: 128, 32>}, {pipeline_mode = #tpu.pipeline_mode<synchronous>, transform_indices = @transform_1, window_bounds = array<i64: 32, 128>}, {transform_indices = @transform_2, window_bounds = array<i64: 128, 128>}, {pipeline_mode = #tpu.pipeline_mode<synchronous>, transform_indices = @transform_3, window_bounds = array<i64: 1, 128>}, {transform_indices = @transform_4, window_bounds = array<i64: 128, 128>}]} {
    %c0_i32 = arith.constant 0 : i32
    %0 = arith.cmpi eq, %arg1, %c0_i32 : i32
    %1 = arith.extui %0 : i1 to i32
    %c0_i32_0 = arith.constant 0 : i32
    %2 = arith.cmpi ne, %1, %c0_i32_0 : i32
    scf.if %2 {
      %c0_12 = arith.constant 0 : index
      %c0_13 = arith.constant 0 : index
      %15 = vector.load %arg5[%c0_12, %c0_13] : memref<1x128xf32, #tpu.memory_space<vmem>>, vector<1x128xf32>
      %16 = vector.shape_cast %15 : vector<1x128xf32> to vector<1x128xf32>
      %17 = vector.broadcast %16 : vector<1x128xf32> to vector<128x128xf32>
      %c0_14 = arith.constant 0 : index
      %c0_15 = arith.constant 0 : index
      %18 = vector.load %arg7[%c0_14, %c0_15] : memref<128x128xf32, #tpu.memory_space<vmem>>, vector<128x128xf32>
      tpu.vector_store %arg7[%c0_14, %c0_15], %17 {strides = array<i32>} : memref<128x128xf32, #tpu.memory_space<vmem>>, vector<128x128xf32>,
    } else {
    }
    %c0 = arith.constant 0 : index
    %c0_1 = arith.constant 0 : index
    %3 = vector.load %arg2[%c0, %c0_1] : memref<128x32xbf16, #tpu.memory_space<vmem>>, vector<128x32xbf16>
    %c0_2 = arith.constant 0 : index
    %c0_3 = arith.constant 0 : index
    %4 = vector.load %arg3[%c0_2, %c0_3] : memref<32x128xbf16, #tpu.memory_space<vmem>>, vector<32x128xbf16>
    %cst = arith.constant dense<0.000000e+00> : vector<128x128xf32>
    %5 = tpu.matmul %3, %4, %cst {dimension_numbers = #tpu.dot_dimension_numbers<[1], [0], [0], [1], [0, 0, 1, 1], [], []>} : vector<128x32xbf16>, vector<32x128xbf16>, vector<128x128xf32> -> vector<128x128xf32>
    %c0_4 = arith.constant 0 : index
    %c0_5 = arith.constant 0 : index
    %6 = vector.load %arg7[%c0_4, %c0_5] : memref<128x128xf32, #tpu.memory_space<vmem>>, vector<128x128xf32>
    %c0_6 = arith.constant 0 : index
    %c0_7 = arith.constant 0 : index
    %7 = vector.load %arg4[%c0_6, %c0_7] : memref<128x128xbf16, #tpu.memory_space<vmem>>, vector<128x128xbf16>
    %8 = arith.truncf %5 : vector<128x128xf32> to vector<128x128xbf16>
    %cst_8 = arith.constant dense<0.000000e+00> : vector<128x128xf32>
    %9 = tpu.matmul %7, %8, %cst_8 {dimension_numbers = #tpu.dot_dimension_numbers<[1], [0], [0], [1], [0, 0, 1, 1], [], []>} : vector<128x128xbf16>, vector<128x128xbf16>, vector<128x128xf32> -> vector<128x128xf32>
    %10 = arith.addf %6, %9 : vector<128x128xf32>
    %c0_9 = arith.constant 0 : index
    %c0_10 = arith.constant 0 : index
    %11 = vector.load %arg7[%c0_9, %c0_10] : memref<128x128xf32, #tpu.memory_space<vmem>>, vector<128x128xf32>
    tpu.vector_store %arg7[%c0_9, %c0_10], %10 {strides = array<i32>} : memref<128x128xf32, #tpu.memory_space<vmem>>, vector<128x128xf32>,
    %c1_i32 = arith.constant 1 : i32
    %12 = arith.cmpi eq, %arg1, %c1_i32 : i32
    %13 = arith.extui %12 : i1 to i32
    %c0_i32_11 = arith.constant 0 : i32
    %14 = arith.cmpi ne, %13, %c0_i32_11 : i32
    scf.if %14 {
      %c0_12 = arith.constant 0 : index
      %c0_13 = arith.constant 0 : index
      %15 = vector.load %arg7[%c0_12, %c0_13] : memref<128x128xf32, #tpu.memory_space<vmem>>, vector<128x128xf32>
      %c0_14 = arith.constant 0 : index
      %c0_15 = arith.constant 0 : index
      %16 = vector.load %arg6[%c0_14, %c0_15] : memref<128x128xf32, #tpu.memory_space<vmem>>, vector<128x128xf32>
      tpu.vector_store %arg6[%c0_14, %c0_15], %15 {strides = array<i32>} : memref<128x128xf32, #tpu.memory_space<vmem>>, vector<128x128xf32>,
    } else {
    }
    return
  }
  func.func @transform_0(%arg0: i32, %arg1: i32) -> (i32, i32) {
    %c0_i32 = arith.constant 0 : i32
    %c0_i32_0 = arith.constant 0 : i32
    return %arg1, %c0_i32 : i32, i32
  }
  func.func @transform_1(%arg0: i32, %arg1: i32) -> (i32, i32) {
    %c0_i32 = arith.constant 0 : i32
    %c0_i32_0 = arith.constant 0 : i32
    %c0_i32_1 = arith.constant 0 : i32
    return %c0_i32, %c0_i32_0 : i32, i32
  }
  func.func @transform_2(%arg0: i32, %arg1: i32) -> (i32, i32) {
    %c0_i32 = arith.constant 0 : i32
    return %arg0, %arg1 : i32, i32
  }
  func.func @transform_3(%arg0: i32, %arg1: i32) -> (i32, i32) {
    %c0_i32 = arith.constant 0 : i32
    %c0_i32_0 = arith.constant 0 : i32
    %c0_i32_1 = arith.constant 0 : i32
    return %c0_i32, %c0_i32_0 : i32, i32
  }
  func.func @transform_4(%arg0: i32, %arg1: i32) -> (i32, i32) {
    %c0_i32 = arith.constant 0 : i32
    %c0_i32_0 = arith.constant 0 : i32
    return %arg0, %c0_i32 : i32, i32
  }
}

</mosaic_0001>

<llo_original>
// kernel: graph_convolution.1
$region0: #{graph_convolution.1}
  #allocation0 [shape = 'u32[]', space=smem, size = 0x4, offset = 0x4, fixed_abs, tag = 'smem constant byte address 0x4 - core index']
  #allocation1 [shape = 'u32[72,128]{1,0:T(1,128)}', space=vmem, size = 0x9000, scoped, tag = 'internal scratch']
  #allocation2 [shape = 'f32[128,128]{1,0:T(8,128)}', space=vmem, size = 0x10000, scoped, tag = 'scratch operand']
  %s0 = inlined_call_operand.vmem [shape: bf16[256,32], index: 0, kind: input, shape index: {}]
  %s1 = inlined_call_operand.vmem [shape: bf16[32,128], index: 1, kind: input, shape index: {}]
  %s2 = inlined_call_operand.vmem [shape: bf16[256,256], index: 2, kind: input, shape index: {}]
  %s3 = inlined_call_operand.vmem [shape: f32[1,128], index: 3, kind: input, shape index: {}]
  %s4 = inlined_call_operand.vmem [shape: f32[256,128], index: 4, kind: output, shape index: {}]
  %s5 = sld [smem:[#allocation0]]
  $region98: #{graph_convolution.1} parent=0
    _
  %s7 = ssub.s32 1, %s5
  %s8 = scalar_select 0, %s7, %s5
  $region1: #{graph_convolution.1} parent=0
    #allocation3 [shape = 'u8[65536]{0}', space=vmem, size = 0x10000, scoped, tag = 'input window, operand 2']
    loop: start=0, step=1, limit=6
    $region2: #{graph_convolution.1} parent=1 // loop_pre_header
      _
    $region3: #{graph_convolution.1} parent=1 // loop_header
      %s10 = sphi 0, %s14
      %p11 = scmp.ge.s32.totalorder %s10, 6
      %s17 = sphi 0, %s29
      %s18 = sphi 0, %s25
      %s19 = sphi 0, %s17
      %s20 = sphi 0, %s18
      %s21 = sphi 0, %s19
      %s22 = sphi 0, %s20
      %s32 = sphi 0, %s34
      %s35 = sphi 0, %s32
      %s36 = sphi 0, %s35
      %s52 = sphi 0, %s36
      %s56 = sphi 0, %s56
      %s58 = sphi 0, %s56
      %s59 = sphi 0, %s58
      %s73 = sphi 0, %s59
      %s81 = sphi 0, %s83
      %s84 = sphi 0, %s81
      %s85 = sphi 0, %s84
      %s101 = sphi 0, %s85
      %s105 = sphi 0, %s105
      %s107 = sphi 0, %s105
      %s108 = sphi 0, %s107
      %s122 = sphi 0, %s108
      %s128 = sphi 0, %s130
      %s131 = sphi 0, %s128
      %s132 = sphi 0, %s131
      %s148 = sphi 0, %s132
    $region4: #{graph_convolution.1} parent=1 // loop_header_branch
      %13 = sbr.rel (%p11) target = $region8
    $region5: #{graph_convolution.1} parent=1 // loop_body
      %s15 = ssub.s32 %s10, 1
      %s16 = ssub.s32 %s10, 2
      %s23 = sadd.s32 1, %s18
      %p24 = scmp.ge.s32.totalorder %s23, 2
      %s25 = scalar_select %p24, 0, %s23
      %s26 = sadd.s32 1, %s17
      %s27 = scalar_select %p24, %s26, %s17
      %p28 = scmp.ge.s32.totalorder %s27, 2
      %s29 = scalar_select %p28, 0, %s27
      %s30 = ssub.s32 %s18, %s25
      %p31 = scmp.eq.s32.totalorder %s30, 0
      %s33 = sadd.s32 %s32, 1
      %s34 = scalar_select %p31, %s32, %s33
      %p37 = pneg %p31
      %p38 = scmp.eq.s32.totalorder %s10, 3
      %p39 = por %p37, %p38
      %p40 = scmp.ne.s32.totalorder %s32, %s35
      %p41 = scmp.eq.s32.totalorder %s10, 0
      %p42 = por %p40, %p41
      %p43 = scmp.ne.s32.totalorder %s32, %s35
      %p44 = scmp.eq.s32.totalorder %s15, 3
      %p45 = por %p43, %p44
      %p46 = scmp.ne.s32.totalorder %s35, %s36
      %p47 = scmp.eq.s32.totalorder %s15, 0
      %p48 = por %p46, %p47
      %p49 = scmp.ne.s32.totalorder %s35, %s36
      %p50 = scmp.eq.s32.totalorder %s16, 3
      %p51 = por %p49, %p50
      %p53 = scmp.ne.s32.totalorder %s36, %s52
      %p54 = scmp.eq.s32.totalorder %s16, 0
      %p55 = por %p53, %p54
      %s57 = sadd.s32 %s56, 1
      %p60 = scmp.eq.s32.totalorder %s10, 3
      %p61 = scmp.ne.s32.totalorder %s56, %s58
      %p62 = scmp.eq.s32.totalorder %s10, 0
      %p63 = por %p61, %p62
      %p64 = scmp.ne.s32.totalorder %s56, %s58
      %p65 = scmp.eq.s32.totalorder %s15, 3
      %p66 = por %p64, %p65
      %p67 = scmp.ne.s32.totalorder %s58, %s59
      %p68 = scmp.eq.s32.totalorder %s15, 0
      %p69 = por %p67, %p68
      %p70 = scmp.ne.s32.totalorder %s58, %s59
      %p71 = scmp.eq.s32.totalorder %s16, 3
      %p72 = por %p70, %p71
      %p74 = scmp.ne.s32.totalorder %s59, %s73
      %p75 = scmp.eq.s32.totalorder %s16, 0
      %p76 = por %p74, %p75
      %s77 = ssub.s32 %s17, %s29
      %s78 = ssub.s32 %s18, %s25
      %s79 = sor.u32 %s77, %s78
      %p80 = scmp.eq.s32.totalorder %s79, 0
      %s82 = sadd.s32 %s81, 1
      %s83 = scalar_select %p80, %s81, %s82
      %p86 = pneg %p80
      %p87 = scmp.eq.s32.totalorder %s10, 3
      %p88 = por %p86, %p87
      %p89 = scmp.ne.s32.totalorder %s81, %s84
      %p90 = scmp.eq.s32.totalorder %s10, 0
      %p91 = por %p89, %p90
      %p92 = scmp.ne.s32.totalorder %s81, %s84
      %p93 = scmp.eq.s32.totalorder %s15, 3
      %p94 = por %p92, %p93
      %p95 = scmp.ne.s32.totalorder %s84, %s85
      %p96 = scmp.eq.s32.totalorder %s15, 0
      %p97 = por %p95, %p96
      %p98 = scmp.ne.s32.totalorder %s84, %s85
      %p99 = scmp.eq.s32.totalorder %s16, 3
      %p100 = por %p98, %p99
      %p102 = scmp.ne.s32.totalorder %s85, %s101
      %p103 = scmp.eq.s32.totalorder %s16, 0
      %p104 = por %p102, %p103
      %s106 = sadd.s32 %s105, 1
      %p109 = scmp.eq.s32.totalorder %s10, 3
      %p110 = scmp.ne.s32.totalorder %s105, %s107
      %p111 = scmp.eq.s32.totalorder %s10, 0
      %p112 = por %p110, %p111
      %p113 = scmp.ne.s32.totalorder %s105, %s107
      %p114 = scmp.eq.s32.totalorder %s15, 3
      %p115 = por %p113, %p114
      %p116 = scmp.ne.s32.totalorder %s107, %s108
      %p117 = scmp.eq.s32.totalorder %s15, 0
      %p118 = por %p116, %p117
      %p119 = scmp.ne.s32.totalorder %s107, %s108
      %p120 = scmp.eq.s32.totalorder %s16, 3
      %p121 = por %p119, %p120
      %p123 = scmp.ne.s32.totalorder %s108, %s122
      %p124 = scmp.eq.s32.totalorder %s16, 0
      %p125 = por %p123, %p124
      %s126 = ssub.s32 %s17, %s29
      %p127 = scmp.eq.s32.totalorder %s126, 0
      %s129 = sadd.s32 %s128, 1
      %s130 = scalar_select %p127, %s128, %s129
      %p133 = pneg %p127
      %p134 = scmp.eq.s32.totalorder %s10, 3
      %p135 = por %p133, %p134
      %p136 = scmp.ne.s32.totalorder %s128, %s131
      %p137 = scmp.eq.s32.totalorder %s10, 0
      %p138 = por %p136, %p137
      %p139 = scmp.ne.s32.totalorder %s128, %s131
      %p140 = scmp.eq.s32.totalorder %s15, 3
      %p141 = por %p139, %p140
      %p142 = scmp.ne.s32.totalorder %s131, %s132
      %p143 = scmp.eq.s32.totalorder %s15, 0
      %p144 = por %p142, %p143
      %p145 = scmp.ne.s32.totalorder %s131, %s132
      %p146 = scmp.eq.s32.totalorder %s16, 3
      %p147 = por %p145, %p146
      %p149 = scmp.ne.s32.totalorder %s132, %s148
      %p150 = scmp.eq.s32.totalorder %s16, 0
      %p151 = por %p149, %p150
      %p152 = scmp.le.s32.totalorder 1, %s10
      %p153 = scmp.lt.s32.totalorder %s10, 5
      %p154 = pnand %p152, %p153
      %p155 = pneg %p154
      // Predicated region
      $region9: #{graph_convolution.1} parent=5 // pred_check
        _
      $region10: #{graph_convolution.1} parent=5 // pred_check_branch
        %157 = sbr.rel (%p154) target = $region12
      $region11: #{graph_convolution.1} parent=5 // pred_region
        %s158 = ssub.s32 %s10, 1
        // Predicated region
        $region13: #{graph_convolution.1} parent=11 // pred_check
          %p159 = pneg %p69
        $region14: #{graph_convolution.1} parent=11 // pred_check_branch
          %161 = sbr.rel (%p159) target = $region16
        $region15: #{graph_convolution.1} parent=11 // pred_region
          _
        $region16: #{graph_convolution.1} parent=11 // pred_fallthru
          _
        // Predicated region
        $region17: #{graph_convolution.1} parent=11 // pred_check
          %p162 = pneg %p118
        $region18: #{graph_convolution.1} parent=11 // pred_check_branch
          %164 = sbr.rel (%p162) target = $region20
        $region19: #{graph_convolution.1} parent=11 // pred_region
          _
        $region20: #{graph_convolution.1} parent=11 // pred_fallthru
          _
      $region12: #{graph_convolution.1} parent=5 // pred_fallthru
        _
      %p165 = scmp.lt.s32.totalorder %s10, 4
      // Predicated region
      $region21: #{graph_convolution.1} parent=5 // pred_check
        %p166 = pneg %p165
      $region22: #{graph_convolution.1} parent=5 // pred_check_branch
        %168 = sbr.rel (%p166) target = $region24
      $region23: #{graph_convolution.1} parent=5 // pred_region
        // Predicated region
        $region25: #{graph_convolution.1} parent=23 // pred_check
          %p169 = pneg %p42
        $region26: #{graph_convolution.1} parent=23 // pred_check_branch
          %171 = sbr.rel (%p169) target = $region28
        $region27: #{graph_convolution.1} parent=23 // pred_region
          %s172 = smul.u32 16, %s18
          %p173 = scmp.lt.s32.totalorder %s172, 31
          %s174 = scalar_select %p173, %s172, 31
          %s175 = smul.addr %s174, 4
          %s176 = scalar_lea.vmem %s0, %s175
          %s177 = smul.u32 16, %s18
        $region28: #{graph_convolution.1} parent=23 // pred_fallthru
          _
        // Predicated region
        $region29: #{graph_convolution.1} parent=23 // pred_check
          %p178 = pneg %p91
        $region30: #{graph_convolution.1} parent=23 // pred_check_branch
          %180 = sbr.rel (%p178) target = $region32
        $region31: #{graph_convolution.1} parent=23 // pred_region
          %s181 = sand.u32 %s81, 1
          %s182 = sand.u32 %s81, 1
          %s183 = smul.addr %s182, 64
          %s184 = scalar_lea.vmem [#allocation3], %s183
          %s185 = smul.u32 16, %s17
          %s186 = smul.addr %s185, 2
          %s187 = sadd.s32 %s18, %s186
          %s188 = smul.addr %s187, 4
          %s189 = scalar_lea.vmem %s2, %s188
          // Predicated region
          $region33: #{graph_convolution.1} parent=31 // pred_check
            _
          $region34: #{graph_convolution.1} parent=31 // pred_check_branch
            %191 = sbr.rel (0) target = $region36
          $region35: #{graph_convolution.1} parent=31 // pred_region
            // Predicated region
            $region37: #{graph_convolution.1} parent=35 // pred_check
              _
            $region38: #{graph_convolution.1} parent=35 // pred_check_branch
              %193 = sbr.rel target = $region40
            $region39: #{graph_convolution.1} parent=35 // pred_region
              // Predicated region
              $region52: #{graph_convolution.1} parent=39 // pred_check
                _
              $region53: #{graph_convolution.1} parent=39 // pred_check_branch
                %239 = sbr.rel (0) target = $region55
              $region54: #{graph_convolution.1} parent=39 // pred_region
                loop: start=0, step=1, limit=1
                $region56: #{graph_convolution.1} parent=54 // loop_pre_header
                  _
                $region57: #{graph_convolution.1} parent=54 // loop_header
                  %s241 = sphi 0, %s245
                  %p242 = scmp.ge.s32.totalorder %s241, 1
                  %s246 = sphi %s189, %s189
                  %s247 = sphi %s184, %s184
                $region58: #{graph_convolution.1} parent=54 // loop_header_branch
                  %244 = sbr.rel (%p242) target = $region62
                $region59: #{graph_convolution.1} parent=54 // loop_body
                  _
                $region60: #{graph_convolution.1} parent=54 // loop_footer
                  %s245 = sadd.s32 1, %s241
                $region61: #{graph_convolution.1} parent=54 // loop_footer_branch
                  %240 = sbr.rel target = $region57
                $region62: #{graph_convolution.1} parent=54 // loop_exit
                  _
                %s249 = ssub.s32 16, 1
                loop: start=0, step=1, limit=1
                $region63: #{graph_convolution.1} parent=54 // loop_pre_header
                  _
                $region64: #{graph_convolution.1} parent=54 // loop_header
                  %s251 = sphi 0, %s255
                  %p252 = scmp.ge.s32.totalorder %s251, 1
                  %s256 = sphi %s189, %s189
                  %s257 = sphi %s184, %s184
                $region65: #{graph_convolution.1} parent=54 // loop_header_branch
                  %254 = sbr.rel (%p252) target = $region69
                $region66: #{graph_convolution.1} parent=54 // loop_body
                  %v258 = vld [vmem:[%s256] sm:%s249]
                  %259 = vst [vmem:[%s257] sm:%s249] %v258
                  %v260 = vld [vmem:[%s256 + $0x8] sm:%s249]
                  %261 = vst [vmem:[%s257 + $0x4] sm:%s249] %v260
                  %v262 = vld [vmem:[%s256 + $0x10] sm:%s249]
                  %263 = vst [vmem:[%s257 + $0x8] sm:%s249] %v262
                  %v264 = vld [vmem:[%s256 + $0x18] sm:%s249]
                  %265 = vst [vmem:[%s257 + $0xc] sm:%s249] %v264
                  %v266 = vld [vmem:[%s256 + $0x20] sm:%s249]
                  %267 = vst [vmem:[%s257 + $0x10] sm:%s249] %v266
                  %v268 = vld [vmem:[%s256 + $0x28] sm:%s249]
                  %269 = vst [vmem:[%s257 + $0x14] sm:%s249] %v268
                  %v270 = vld [vmem:[%s256 + $0x30] sm:%s249]
                  %271 = vst [vmem:[%s257 + $0x18] sm:%s249] %v270
                  %v272 = vld [vmem:[%s256 + $0x38] sm:%s249]
                  %273 = vst [vmem:[%s257 + $0x1c] sm:%s249] %v272
                  %v274 = vld [vmem:[%s256 + $0x40] sm:%s249]
                  %275 = vst [vmem:[%s257 + $0x20] sm:%s249] %v274
                  %v276 = vld [vmem:[%s256 + $0x48] sm:%s249]
                  %277 = vst [vmem:[%s257 + $0x24] sm:%s249] %v276
                  %v278 = vld [vmem:[%s256 + $0x50] sm:%s249]
                  %279 = vst [vmem:[%s257 + $0x28] sm:%s249] %v278
                  %v280 = vld [vmem:[%s256 + $0x58] sm:%s249]
                  %281 = vst [vmem:[%s257 + $0x2c] sm:%s249] %v280
                  %v282 = vld [vmem:[%s256 + $0x60] sm:%s249]
                  %283 = vst [vmem:[%s257 + $0x30] sm:%s249] %v282
                  %v284 = vld [vmem:[%s256 + $0x68] sm:%s249]
                  %285 = vst [vmem:[%s257 + $0x34] sm:%s249] %v284
                  %v286 = vld [vmem:[%s256 + $0x70] sm:%s249]
                  %287 = vst [vmem:[%s257 + $0x38] sm:%s249] %v286
                  %v288 = vld [vmem:[%s256 + $0x78] sm:%s249]
                  %289 = vst [vmem:[%s257 + $0x3c] sm:%s249] %v288
                $region67: #{graph_convolution.1} parent=54 // loop_footer
                  %s255 = sadd.s32 1, %s251
                $region68: #{graph_convolution.1} parent=54 // loop_footer_branch
                  %250 = sbr.rel target = $region64
                $region69: #{graph_convolution.1} parent=54 // loop_exit
                  _
              $region55: #{graph_convolution.1} parent=39 // pred_fallthru
                _
            $region40: #{graph_convolution.1} parent=35 // pred_fallthru
              _
            // Predicated region
            $region41: #{graph_convolution.1} parent=35 // pred_check
              _
            $region42: #{graph_convolution.1} parent=35 // pred_check_branch
              %195 = sbr.rel (0) target = $region44
            $region43: #{graph_convolution.1} parent=35 // pred_region
              %s197 = ssub.s32 16, 1
              loop: start=0, step=1, limit=1
              $region45: #{graph_convolution.1} parent=43 // loop_pre_header
                _
              $region46: #{graph_convolution.1} parent=43 // loop_header
                %s199 = sphi 0, %s203
                %p200 = scmp.ge.s32.totalorder %s199, 1
                %s204 = sphi %s189, %s189
                %s205 = sphi %s184, %s184
              $region47: #{graph_convolution.1} parent=43 // loop_header_branch
                %202 = sbr.rel (%p200) target = $region51
              $region48: #{graph_convolution.1} parent=43 // loop_body
                %v206 = vld [vmem:[%s204] sm:%s197]
                %207 = vst [vmem:[%s205] sm:%s197] %v206
                %v208 = vld [vmem:[%s204 + $0x8] sm:%s197]
                %209 = vst [vmem:[%s205 + $0x4] sm:%s197] %v208
                %v210 = vld [vmem:[%s204 + $0x10] sm:%s197]
                %211 = vst [vmem:[%s205 + $0x8] sm:%s197] %v210
                %v212 = vld [vmem:[%s204 + $0x18] sm:%s197]
                %213 = vst [vmem:[%s205 + $0xc] sm:%s197] %v212
                %v214 = vld [vmem:[%s204 + $0x20] sm:%s197]
                %215 = vst [vmem:[%s205 + $0x10] sm:%s197] %v214
                %v216 = vld [vmem:[%s204 + $0x28] sm:%s197]
                %217 = vst [vmem:[%s205 + $0x14] sm:%s197] %v216
                %v218 = vld [vmem:[%s204 + $0x30] sm:%s197]
                %219 = vst [vmem:[%s205 + $0x18] sm:%s197] %v218
                %v220 = vld [vmem:[%s204 + $0x38] sm:%s197]
                %221 = vst [vmem:[%s205 + $0x1c] sm:%s197] %v220
                %v222 = vld [vmem:[%s204 + $0x40] sm:%s197]
                %223 = vst [vmem:[%s205 + $0x20] sm:%s197] %v222
                %v224 = vld [vmem:[%s204 + $0x48] sm:%s197]
                %225 = vst [vmem:[%s205 + $0x24] sm:%s197] %v224
                %v226 = vld [vmem:[%s204 + $0x50] sm:%s197]
                %227 = vst [vmem:[%s205 + $0x28] sm:%s197] %v226
                %v228 = vld [vmem:[%s204 + $0x58] sm:%s197]
                %229 = vst [vmem:[%s205 + $0x2c] sm:%s197] %v228
                %v230 = vld [vmem:[%s204 + $0x60] sm:%s197]
                %231 = vst [vmem:[%s205 + $0x30] sm:%s197] %v230
                %v232 = vld [vmem:[%s204 + $0x68] sm:%s197]
                %233 = vst [vmem:[%s205 + $0x34] sm:%s197] %v232
                %v234 = vld [vmem:[%s204 + $0x70] sm:%s197]
                %235 = vst [vmem:[%s205 + $0x38] sm:%s197] %v234
                %v236 = vld [vmem:[%s204 + $0x78] sm:%s197]
                %237 = vst [vmem:[%s205 + $0x3c] sm:%s197] %v236
              $region49: #{graph_convolution.1} parent=43 // loop_footer
                %s203 = sadd.s32 1, %s199
              $region50: #{graph_convolution.1} parent=43 // loop_footer_branch
                %198 = sbr.rel target = $region46
              $region51: #{graph_convolution.1} parent=43 // loop_exit
                _
            $region44: #{graph_convolution.1} parent=35 // pred_fallthru
              _
          $region36: #{graph_convolution.1} parent=31 // pred_fallthru
            _
          %290 = vnop
        $region32: #{graph_convolution.1} parent=23 // pred_fallthru
          _
      $region24: #{graph_convolution.1} parent=5 // pred_fallthru
        _
      %p291 = scmp.le.s32.totalorder 1, %s10
      %p292 = scmp.lt.s32.totalorder %s10, 5
      %p293 = pnand %p291, %p292
      %p294 = pneg %p293
      // Predicated region
      $region70: #{graph_convolution.1} parent=5 // pred_check
        _
      $region71: #{graph_convolution.1} parent=5 // pred_check_branch
        %296 = sbr.rel (%p293) target = $region73
      $region72: #{graph_convolution.1} parent=5 // pred_region
        %s297 = ssub.s32 %s10, 1
        %s298 = sand.u32 %s84, 1
        %s299 = sand.u32 %s84, 1
        %s300 = smul.addr %s299, 64
        %s301 = scalar_lea.vmem [#allocation3], %s300
        // Predicated region
        $region74: #{graph_convolution.1} parent=72 // pred_check
          %p302 = pneg %p97
        $region75: #{graph_convolution.1} parent=72 // pred_check_branch
          %304 = sbr.rel (%p302) target = $region77
        $region76: #{graph_convolution.1} parent=72 // pred_region
          _
        $region77: #{graph_convolution.1} parent=72 // pred_fallthru
          _
        %s305 = smul.u32 16, %s20
        %p306 = scmp.lt.s32.totalorder %s305, 31
        %s307 = scalar_select %p306, %s305, 31
        %s308 = smul.addr %s307, 4
        %s309 = scalar_lea.vmem %s0, %s308
        %p310 = pneg %p48
        %p311 = pneg %p45
        %p312 = pneg %p69
        %p313 = pneg %p66
        %s314 = sand.u32 %s84, 1
        %s315 = sand.u32 %s84, 1
        %s316 = smul.addr %s315, 64
        %s317 = scalar_lea.vmem [#allocation3], %s316
        %p318 = pneg %p97
        %p319 = pneg %p94
        %p320 = pneg %p118
        %p321 = pneg %p115
        %p322 = pneg %p144
        %p323 = pneg %p141
        %s324 = smul.u32 16, %s19
        %p325 = scmp.lt.s32.totalorder %s324, 31
        %s326 = scalar_select %p325, %s324, 31
        %s327 = smul.addr %s326, 8
        %s328 = scalar_lea.vmem %s4, %s327
        %s329 = smul.u32 16, %s20
        %p330 = scmp.lt.s32.totalorder %s329, 31
        %s331 = scalar_select %p330, %s329, 31
        %s332 = smul.addr %s331, 4
        %s333 = scalar_lea.vmem %s0, %s332
        %s334 = smul.u32 16, %s20
        %s335 = smul.u32 16, %s19
        %s336 = smul.u32 16, %s19
        %p337 = scmp.lt.s32.totalorder %s336, 31
        %s338 = scalar_select %p337, %s336, 31
        %s339 = smul.addr %s338, 8
        %s340 = scalar_lea.vmem %s4, %s339
        %s341 = smul.u32 16, %s19
        %p343 = scmp.eq.s32.totalorder %s20, 0
        // Predicated region
        $region78: #{graph_convolution.1} parent=72 // pred_check
          %p344 = pneg %p343
        $region79: #{graph_convolution.1} parent=72 // pred_check_branch
          %346 = sbr.rel (%p344) target = $region81
        $region80: #{graph_convolution.1} parent=72 // pred_region
          %v347 = vld [vmem:[%s3] sm:$0x1]
          %v349 = vperm.slane %v347, 0
          %351 = vst [vmem:[#allocation2] sm:$0xff] %v349
          %352 = vst [vmem:[#allocation2 + $0x8] sm:$0xff] %v349
          %353 = vst [vmem:[#allocation2 + $0x10] sm:$0xff] %v349
          %354 = vst [vmem:[#allocation2 + $0x18] sm:$0xff] %v349
          %355 = vst [vmem:[#allocation2 + $0x20] sm:$0xff] %v349
          %356 = vst [vmem:[#allocation2 + $0x28] sm:$0xff] %v349
          %357 = vst [vmem:[#allocation2 + $0x30] sm:$0xff] %v349
          %358 = vst [vmem:[#allocation2 + $0x38] sm:$0xff] %v349
          %359 = vst [vmem:[#allocation2 + $0x40] sm:$0xff] %v349
          %360 = vst [vmem:[#allocation2 + $0x48] sm:$0xff] %v349
          %361 = vst [vmem:[#allocation2 + $0x50] sm:$0xff] %v349
          %362 = vst [vmem:[#allocation2 + $0x58] sm:$0xff] %v349
          %363 = vst [vmem:[#allocation2 + $0x60] sm:$0xff] %v349
          %364 = vst [vmem:[#allocation2 + $0x68] sm:$0xff] %v349
          %365 = vst [vmem:[#allocation2 + $0x70] sm:$0xff] %v349
          %366 = vst [vmem:[#allocation2 + $0x78] sm:$0xff] %v349
        $region81: #{graph_convolution.1} parent=72 // pred_fallthru
          _
        %v367 = vld [vmem:[%s333] sm:$0xf]
        %v368 = vld [vmem:[%s333 + $0x4] sm:$0xf]
        %v369 = vld [vmem:[%s333 + $0x8] sm:$0xf]
        %v370 = vld [vmem:[%s333 + $0xc] sm:$0xf]
        %v371 = vld [vmem:[%s333 + $0x10] sm:$0xf]
        %v372 = vld [vmem:[%s333 + $0x14] sm:$0xf]
        %v373 = vld [vmem:[%s333 + $0x18] sm:$0xf]
        %v374 = vld [vmem:[%s333 + $0x1c] sm:$0xf]
        %v375 = vld [vmem:[%s333 + $0x20] sm:$0xf]
        %v376 = vld [vmem:[%s333 + $0x24] sm:$0xf]
        %v377 = vld [vmem:[%s333 + $0x28] sm:$0xf]
        %v378 = vld [vmem:[%s333 + $0x2c] sm:$0xf]
        %v379 = vld [vmem:[%s333 + $0x30] sm:$0xf]
        %v380 = vld [vmem:[%s333 + $0x34] sm:$0xf]
        %v381 = vld [vmem:[%s333 + $0x38] sm:$0xf]
        %v382 = vld [vmem:[%s333 + $0x3c] sm:$0xf]
        %v383 = vld [vmem:[%s1] sm:$0xf]
        %v384 = vld [vmem:[%s1 + $0x4] sm:$0xf]
        %v385 = vld [vmem:[%s1 + $0x8] sm:$0xf]
        %v386 = vld [vmem:[%s1 + $0xc] sm:$0xf]
        %v403 = vunpack.c.l.b16 %v367
        %v404 = vunpack.c.l.b16 %v368
        %v405 = vunpack.c.l.b16 %v369
        %v406 = vunpack.c.l.b16 %v370
        %v407 = vunpack.c.l.b16 %v371
        %v408 = vunpack.c.l.b16 %v372
        %v409 = vunpack.c.l.b16 %v373
        %v410 = vunpack.c.l.b16 %v374
        %v411 = vunpack.c.l.b16 %v375
        %v412 = vunpack.c.l.b16 %v376
        %v413 = vunpack.c.l.b16 %v377
        %v414 = vunpack.c.l.b16 %v378
        %v415 = vunpack.c.l.b16 %v379
        %v416 = vunpack.c.l.b16 %v380
        %v417 = vunpack.c.l.b16 %v381
        %v418 = vunpack.c.l.b16 %v382
        %v419 = vpack.c.b16 %v404, %v403
        %v420 = vpack.c.b16 %v406, %v405
        %v421 = vpack.c.b16 %v408, %v407
        %v422 = vpack.c.b16 %v410, %v409
        %v423 = vpack.c.b16 %v412, %v411
        %v424 = vpack.c.b16 %v414, %v413
        %v425 = vpack.c.b16 %v416, %v415
        %v426 = vpack.c.b16 %v418, %v417
        %v431 = vunpack.c.l.b16 %v383
        %v432 = vunpack.c.l.b16 %v384
        %v433 = vunpack.c.l.b16 %v385
        %v434 = vunpack.c.l.b16 %v386
        %v435 = vpack.c.b16 %v432, %v431
        %v436 = vpack.c.b16 %v434, %v433
        %vm439 = vcmask 261120
        %v441 = vsel %vm439, %v419, 0
        %v444 = vsel %vm439, %v420, 0
        %v447 = vsel %vm439, %v421, 0
        %v450 = vsel %vm439, %v422, 0
        %v453 = vsel %vm439, %v423, 0
        %v456 = vsel %vm439, %v424, 0
        %v459 = vsel %vm439, %v425, 0
        %v462 = vsel %vm439, %v426, 0
        %464 = vmatpush.bf16.msra.mxu0 0
        %465 = vmatpush.bf16.msra.mxu0 0
        %466 = vmatpush.bf16.msra.mxu0 0
        %467 = vmatpush.bf16.msra.mxu0 0
        %468 = vmatpush.bf16.msra.mxu0 0
        %469 = vmatpush.bf16.msra.mxu0 0
        %470 = vmatpush.bf16.msra.mxu0 %v436
        %471 = vmatpush.bf16.msra.mxu0 %v435
        %472 = vmatmul.bf16.gmra.mxu0 %v441
        %v473 = vpop.f32.mrf.mxu0
        %v474 = vadd.f32 0.0, %v473
        %v475 = vpop.f32.mrf.mxu0
        %v476 = vadd.f32 0.0, %v475
        %477 = vmatmul.bf16.gmra.mxu0 %v444
        %v478 = vpop.f32.mrf.mxu0
        %v479 = vadd.f32 0.0, %v478
        %v480 = vpop.f32.mrf.mxu0
        %v481 = vadd.f32 0.0, %v480
        %482 = vmatmul.bf16.gmra.mxu0 %v447
        %v483 = vpop.f32.mrf.mxu0
        %v484 = vadd.f32 0.0, %v483
        %v485 = vpop.f32.mrf.mxu0
        %v486 = vadd.f32 0.0, %v485
        %487 = vmatmul.bf16.gmra.mxu0 %v450
        %v488 = vpop.f32.mrf.mxu0
        %v489 = vadd.f32 0.0, %v488
        %v490 = vpop.f32.mrf.mxu0
        %v491 = vadd.f32 0.0, %v490
        %492 = vmatmul.bf16.gmra.mxu0 %v453
        %v493 = vpop.f32.mrf.mxu0
        %v494 = vadd.f32 0.0, %v493
        %v495 = vpop.f32.mrf.mxu0
        %v496 = vadd.f32 0.0, %v495
        %497 = vmatmul.bf16.gmra.mxu0 %v456
        %v498 = vpop.f32.mrf.mxu0
        %v499 = vadd.f32 0.0, %v498
        %v500 = vpop.f32.mrf.mxu0
        %v501 = vadd.f32 0.0, %v500
        %502 = vmatmul.bf16.gmra.mxu0 %v459
        %v503 = vpop.f32.mrf.mxu0
        %v504 = vadd.f32 0.0, %v503
        %v505 = vpop.f32.mrf.mxu0
        %v506 = vadd.f32 0.0, %v505
        %507 = vmatmul.bf16.gmra.mxu0 %v462
        %v508 = vpop.f32.mrf.mxu0
        %v509 = vadd.f32 0.0, %v508
        %v510 = vpop.f32.mrf.mxu0
        %v511 = vadd.f32 0.0, %v510
        %512 = vdwg.mxu0
        %v513 = vld [vmem:[#allocation2] sm:$0xff]
        %v514 = vld [vmem:[#allocation2 + $0x8] sm:$0xff]
        %v515 = vld [vmem:[#allocation2 + $0x10] sm:$0xff]
        %v516 = vld [vmem:[#allocation2 + $0x18] sm:$0xff]
        %v517 = vld [vmem:[#allocation2 + $0x20] sm:$0xff]
        %v518 = vld [vmem:[#allocation2 + $0x28] sm:$0xff]
        %v519 = vld [vmem:[#allocation2 + $0x30] sm:$0xff]
        %v520 = vld [vmem:[#allocation2 + $0x38] sm:$0xff]
        %v521 = vld [vmem:[#allocation2 + $0x40] sm:$0xff]
        %v522 = vld [vmem:[#allocation2 + $0x48] sm:$0xff]
        %v523 = vld [vmem:[#allocation2 + $0x50] sm:$0xff]
        %v524 = vld [vmem:[#allocation2 + $0x58] sm:$0xff]
        %v525 = vld [vmem:[#allocation2 + $0x60] sm:$0xff]
        %v526 = vld [vmem:[#allocation2 + $0x68] sm:$0xff]
        %v527 = vld [vmem:[#allocation2 + $0x70] sm:$0xff]
        %v528 = vld [vmem:[#allocation2 + $0x78] sm:$0xff]
        %v529 = vld [vmem:[%s301] sm:$0xf]
        %v530 = vld [vmem:[%s301 + $0x4] sm:$0xf]
        %v531 = vld [vmem:[%s301 + $0x8] sm:$0xf]
        %v532 = vld [vmem:[%s301 + $0xc] sm:$0xf]
        %v533 = vld [vmem:[%s301 + $0x10] sm:$0xf]
        %v534 = vld [vmem:[%s301 + $0x14] sm:$0xf]
        %v535 = vld [vmem:[%s301 + $0x18] sm:$0xf]
        %v536 = vld [vmem:[%s301 + $0x1c] sm:$0xf]
        %v537 = vld [vmem:[%s301 + $0x20] sm:$0xf]
        %v538 = vld [vmem:[%s301 + $0x24] sm:$0xf]
        %v539 = vld [vmem:[%s301 + $0x28] sm:$0xf]
        %v540 = vld [vmem:[%s301 + $0x2c] sm:$0xf]
        %v541 = vld [vmem:[%s301 + $0x30] sm:$0xf]
        %v542 = vld [vmem:[%s301 + $0x34] sm:$0xf]
        %v543 = vld [vmem:[%s301 + $0x38] sm:$0xf]
        %v544 = vld [vmem:[%s301 + $0x3c] sm:$0xf]
        %v545 = vpack.c.bf16 %v476, %v474
        %v546 = vpack.c.bf16 %v481, %v479
        %v547 = vpack.c.bf16 %v486, %v484
        %v548 = vpack.c.bf16 %v491, %v489
        %v549 = vpack.c.bf16 %v496, %v494
        %v550 = vpack.c.bf16 %v501, %v499
        %v551 = vpack.c.bf16 %v506, %v504
        %v552 = vpack.c.bf16 %v511, %v509
        %v569 = vunpack.c.l.b16 %v529
        %v570 = vunpack.c.l.b16 %v530
        %v571 = vunpack.c.l.b16 %v531
        %v572 = vunpack.c.l.b16 %v532
        %v573 = vunpack.c.l.b16 %v533
        %v574 = vunpack.c.l.b16 %v534
        %v575 = vunpack.c.l.b16 %v535
        %v576 = vunpack.c.l.b16 %v536
        %v577 = vunpack.c.l.b16 %v537
        %v578 = vunpack.c.l.b16 %v538
        %v579 = vunpack.c.l.b16 %v539
        %v580 = vunpack.c.l.b16 %v540
        %v581 = vunpack.c.l.b16 %v541
        %v582 = vunpack.c.l.b16 %v542
        %v583 = vunpack.c.l.b16 %v543
        %v584 = vunpack.c.l.b16 %v544
        %v585 = vpack.c.b16 %v570, %v569
        %v586 = vpack.c.b16 %v572, %v571
        %v587 = vpack.c.b16 %v574, %v573
        %v588 = vpack.c.b16 %v576, %v575
        %v589 = vpack.c.b16 %v578, %v577
        %v590 = vpack.c.b16 %v580, %v579
        %v591 = vpack.c.b16 %v582, %v581
        %v592 = vpack.c.b16 %v584, %v583
        %601 = vmatpush.bf16.msra.mxu0 %v552
        %602 = vmatpush.bf16.msra.mxu0 %v551
        %603 = vmatpush.bf16.msra.mxu0 %v550
        %604 = vmatpush.bf16.msra.mxu0 %v549
        %605 = vmatpush.bf16.msra.mxu0 %v548
        %606 = vmatpush.bf16.msra.mxu0 %v547
        %607 = vmatpush.bf16.msra.mxu0 %v546
        %608 = vmatpush.bf16.msra.mxu0 %v545
        %609 = vmatmul.bf16.gmra.mxu0 %v585
        %v610 = vpop.f32.mrf.mxu0
        %v611 = vadd.f32 0.0, %v610
        %v612 = vpop.f32.mrf.mxu0
        %v613 = vadd.f32 0.0, %v612
        %614 = vmatmul.bf16.gmra.mxu0 %v586
        %v615 = vpop.f32.mrf.mxu0
        %v616 = vadd.f32 0.0, %v615
        %v617 = vpop.f32.mrf.mxu0
        %v618 = vadd.f32 0.0, %v617
        %619 = vmatmul.bf16.gmra.mxu0 %v587
        %v620 = vpop.f32.mrf.mxu0
        %v621 = vadd.f32 0.0, %v620
        %v622 = vpop.f32.mrf.mxu0
        %v623 = vadd.f32 0.0, %v622
        %624 = vmatmul.bf16.gmra.mxu0 %v588
        %v625 = vpop.f32.mrf.mxu0
        %v626 = vadd.f32 0.0, %v625
        %v627 = vpop.f32.mrf.mxu0
        %v628 = vadd.f32 0.0, %v627
        %629 = vmatmul.bf16.gmra.mxu0 %v589
        %v630 = vpop.f32.mrf.mxu0
        %v631 = vadd.f32 0.0, %v630
        %v632 = vpop.f32.mrf.mxu0
        %v633 = vadd.f32 0.0, %v632
        %634 = vmatmul.bf16.gmra.mxu0 %v590
        %v635 = vpop.f32.mrf.mxu0
        %v636 = vadd.f32 0.0, %v635
        %v637 = vpop.f32.mrf.mxu0
        %v638 = vadd.f32 0.0, %v637
        %639 = vmatmul.bf16.gmra.mxu0 %v591
        %v640 = vpop.f32.mrf.mxu0
        %v641 = vadd.f32 0.0, %v640
        %v642 = vpop.f32.mrf.mxu0
        %v643 = vadd.f32 0.0, %v642
        %644 = vmatmul.bf16.gmra.mxu0 %v592
        %v645 = vpop.f32.mrf.mxu0
        %v646 = vadd.f32 0.0, %v645
        %v647 = vpop.f32.mrf.mxu0
        %v648 = vadd.f32 0.0, %v647
        %649 = vdwg.mxu0
        %v650 = vadd.f32 %v513, %v611
        %v651 = vadd.f32 %v514, %v613
        %v652 = vadd.f32 %v515, %v616
        %v653 = vadd.f32 %v516, %v618
        %v654 = vadd.f32 %v517, %v621
        %v655 = vadd.f32 %v518, %v623
        %v656 = vadd.f32 %v519, %v626
        %v657 = vadd.f32 %v520, %v628
        %v658 = vadd.f32 %v521, %v631
        %v659 = vadd.f32 %v522, %v633
        %v660 = vadd.f32 %v523, %v636
        %v661 = vadd.f32 %v524, %v638
        %v662 = vadd.f32 %v525, %v641
        %v663 = vadd.f32 %v526, %v643
        %v664 = vadd.f32 %v527, %v646
        %v665 = vadd.f32 %v528, %v648
        %666 = vst [vmem:[#allocation2] sm:$0xff] %v650
        %667 = vst [vmem:[#allocation2 + $0x8] sm:$0xff] %v651
        %668 = vst [vmem:[#allocation2 + $0x10] sm:$0xff] %v652
        %669 = vst [vmem:[#allocation2 + $0x18] sm:$0xff] %v653
        %670 = vst [vmem:[#allocation2 + $0x20] sm:$0xff] %v654
        %671 = vst [vmem:[#allocation2 + $0x28] sm:$0xff] %v655
        %672 = vst [vmem:[#allocation2 + $0x30] sm:$0xff] %v656
        %673 = vst [vmem:[#allocation2 + $0x38] sm:$0xff] %v657
        %674 = vst [vmem:[#allocation2 + $0x40] sm:$0xff] %v658
        %675 = vst [vmem:[#allocation2 + $0x48] sm:$0xff] %v659
        %676 = vst [vmem:[#allocation2 + $0x50] sm:$0xff] %v660
        %677 = vst [vmem:[#allocation2 + $0x58] sm:$0xff] %v661
        %678 = vst [vmem:[#allocation2 + $0x60] sm:$0xff] %v662
        %679 = vst [vmem:[#allocation2 + $0x68] sm:$0xff] %v663
        %680 = vst [vmem:[#allocation2 + $0x70] sm:$0xff] %v664
        %681 = vst [vmem:[#allocation2 + $0x78] sm:$0xff] %v665
        %p682 = scmp.eq.s32.totalorder %s20, 1
        // Predicated region
        $region82: #{graph_convolution.1} parent=72 // pred_check
          %p683 = pneg %p682
        $region83: #{graph_convolution.1} parent=72 // pred_check_branch
          %685 = sbr.rel (%p683) target = $region85
        $region84: #{graph_convolution.1} parent=72 // pred_region
          %v686 = vld [vmem:[#allocation2] sm:$0xff]
          %v687 = vld [vmem:[#allocation2 + $0x8] sm:$0xff]
          %v688 = vld [vmem:[#allocation2 + $0x10] sm:$0xff]
          %v689 = vld [vmem:[#allocation2 + $0x18] sm:$0xff]
          %v690 = vld [vmem:[#allocation2 + $0x20] sm:$0xff]
          %v691 = vld [vmem:[#allocation2 + $0x28] sm:$0xff]
          %v692 = vld [vmem:[#allocation2 + $0x30] sm:$0xff]
          %v693 = vld [vmem:[#allocation2 + $0x38] sm:$0xff]
          %v694 = vld [vmem:[#allocation2 + $0x40] sm:$0xff]
          %v695 = vld [vmem:[#allocation2 + $0x48] sm:$0xff]
          %v696 = vld [vmem:[#allocation2 + $0x50] sm:$0xff]
          %v697 = vld [vmem:[#allocation2 + $0x58] sm:$0xff]
          %v698 = vld [vmem:[#allocation2 + $0x60] sm:$0xff]
          %v699 = vld [vmem:[#allocation2 + $0x68] sm:$0xff]
          %v700 = vld [vmem:[#allocation2 + $0x70] sm:$0xff]
          %v701 = vld [vmem:[#allocation2 + $0x78] sm:$0xff]
          %702 = vst [vmem:[%s340] sm:$0xff] %v686
          %703 = vst [vmem:[%s340 + $0x8] sm:$0xff] %v687
          %704 = vst [vmem:[%s340 + $0x10] sm:$0xff] %v688
          %705 = vst [vmem:[%s340 + $0x18] sm:$0xff] %v689
          %706 = vst [vmem:[%s340 + $0x20] sm:$0xff] %v690
          %707 = vst [vmem:[%s340 + $0x28] sm:$0xff] %v691
          %708 = vst [vmem:[%s340 + $0x30] sm:$0xff] %v692
          %709 = vst [vmem:[%s340 + $0x38] sm:$0xff] %v693
          %710 = vst [vmem:[%s340 + $0x40] sm:$0xff] %v694
          %711 = vst [vmem:[%s340 + $0x48] sm:$0xff] %v695
          %712 = vst [vmem:[%s340 + $0x50] sm:$0xff] %v696
          %713 = vst [vmem:[%s340 + $0x58] sm:$0xff] %v697
          %714 = vst [vmem:[%s340 + $0x60] sm:$0xff] %v698
          %715 = vst [vmem:[%s340 + $0x68] sm:$0xff] %v699
          %716 = vst [vmem:[%s340 + $0x70] sm:$0xff] %v700
          %717 = vst [vmem:[%s340 + $0x78] sm:$0xff] %v701
        $region85: #{graph_convolution.1} parent=72 // pred_fallthru
          _
        %s718 = smul.u32 16, %s19
        %p719 = scmp.lt.s32.totalorder %s718, 31
        %s720 = scalar_select %p719, %s718, 31
        %s721 = smul.addr %s720, 8
        %s722 = scalar_lea.vmem %s4, %s721
        // Predicated region
        $region86: #{graph_convolution.1} parent=72 // pred_check
          %p723 = pneg %p141
        $region87: #{graph_convolution.1} parent=72 // pred_check_branch
          %725 = sbr.rel (%p723) target = $region89
        $region88: #{graph_convolution.1} parent=72 // pred_region
          %s726 = smul.u32 16, %s19
        $region89: #{graph_convolution.1} parent=72 // pred_fallthru
          _
      $region73: #{graph_convolution.1} parent=5 // pred_fallthru
        _
      %p727 = scmp.le.s32.totalorder 2, %s10
      // Predicated region
      $region90: #{graph_convolution.1} parent=5 // pred_check
        %p728 = pneg %p727
      $region91: #{graph_convolution.1} parent=5 // pred_check_branch
        %730 = sbr.rel (%p728) target = $region93
      $region92: #{graph_convolution.1} parent=5 // pred_region
        %s731 = ssub.s32 %s10, 2
        // Predicated region
        $region94: #{graph_convolution.1} parent=92 // pred_check
          %p732 = pneg %p147
        $region95: #{graph_convolution.1} parent=92 // pred_check_branch
          %734 = sbr.rel (%p732) target = $region97
        $region96: #{graph_convolution.1} parent=92 // pred_region
          %s735 = smul.u32 16, %s21
          %p736 = scmp.lt.s32.totalorder %s735, 31
          %s737 = scalar_select %p736, %s735, 31
          %s738 = smul.addr %s737, 8
          %s739 = scalar_lea.vmem %s4, %s738
        $region97: #{graph_convolution.1} parent=92 // pred_fallthru
          _
      $region93: #{graph_convolution.1} parent=5 // pred_fallthru
        _
    $region6: #{graph_convolution.1} parent=1 // loop_footer
      %s14 = sadd.s32 1, %s10
    $region7: #{graph_convolution.1} parent=1 // loop_footer_branch
      %9 = sbr.rel target = $region3
    $region8: #{graph_convolution.1} parent=1 // loop_exit
      _

</llo_original>
